<compile_context>
chip_gen: v7x
topology: tpu7x:2x2x1
jax: 0.10.0
libtpu: 0.0.40
codegen_flags: <defaults>
</compile_context>

<pallas_src>
import functools

import jax
import jax.numpy as jnp
from jax import lax
from jax.experimental import pallas as pl
from jax.experimental.pallas import tpu as pltpu


def _round_up(x, m):
    return ((x + m - 1) // m) * m


def _vmem_capacity_bytes():
    """Physical VMEM per TensorCore; conservative 64 MiB fallback (v7x)."""
    try:
        info = pltpu.get_tpu_info()
        cap = int(getattr(info, "vmem_capacity_bytes", 0))
        if cap > 0:
            return cap
    except Exception:
        pass
    return 64 << 20


def _pick_sub_tile(th):
    """In-kernel hidden sub-tile width (keeps the DMA block width unchanged)."""
    for cand in (256, 128):
        if th % cand == 0 and th > cand:
            return cand
    return th


def _gelu_exact_f32(h):
    # torch.nn.GELU default: 0.5*x*(1+erf(x/sqrt(2))), evaluated in f32.
    return 0.5 * h * (1.0 + lax.erf(h * jnp.float32(0.7071067811865476)))


def _fc1_gelu_fc2_partial(x, w1_ref, b1_ref, w2_ref, ths):
    """sum_s GELU(x @ W1[:, s] + b1[s]) @ W2[s, :] over `ths`-wide hidden slices.

    Statically unrolled: LLO can co-issue fc2 MXU work of slice k with the
    VPU/EUP GELU of slice k+1 (different VLIW slots), and the live f32
    intermediate is only (tm, ths) instead of (tm, th).
    """
    th = w1_ref.shape[-1]
    n_sub = max(1, th // ths)
    acc = None
    for s in range(n_sub):
        lo = s * ths
        hi = lo + ths
        h = jnp.dot(x, w1_ref[:, lo:hi], preferred_element_type=jnp.float32)
        h = h + b1_ref[:, lo:hi].astype(jnp.float32)
        h = _gelu_exact_f32(h)
        # drop1: p = 0.0 -> identity.
        p = jnp.dot(h.astype(w2_ref.dtype), w2_ref[lo:hi, :],
                    preferred_element_type=jnp.float32)
        acc = p if acc is None else acc + p
    return acc


def _mlp_kernel_resident(x_ref, w1_ref, b1_ref, w2_ref, b2_ref, o_ref, *, ths):
    """1-D grid over token tiles; full (padded) hidden dim resident in VMEM.

    No accumulator scratch: compute y for this token tile and store directly.
    """
    y = _fc1_gelu_fc2_partial(x_ref[...], w1_ref, b1_ref, w2_ref, ths)
    y = y + b2_ref[...].astype(jnp.float32)
    # drop2: p = 0.0 -> identity.
    o_ref[...] = y.astype(o_ref.dtype)


def _mlp_kernel_tiled(x_ref, w1_ref, b1_ref, w2_ref, b2_ref, o_ref, acc_ref, *, ths):
    """Grid = (token_tiles, hidden_tiles); hidden axis is an 'arbitrary'
    reduction with an f32 VMEM accumulator (written at h==0, added h>0,
    stored + bias at the last hidden step)."""
    h_idx = pl.program_id(1)

    part = _fc1_gelu_fc2_partial(x_ref[...], w1_ref, b1_ref, w2_ref, ths)

    @pl.when(h_idx == 0)
    def _():
        acc_ref[...] = part

    @pl.when(h_idx > 0)
    def _():
        acc_ref[...] += part

    @pl.when(h_idx == pl.num_programs(1) - 1)
    def _():
        y = acc_ref[...] + b2_ref[...].astype(jnp.float32)
        # drop2: p = 0.0 -> identity.
        o_ref[...] = y.astype(o_ref.dtype)


@functools.partial(jax.jit, static_argnames=("tm", "th", "residency_budget_bytes"))
def mlp_pallas(x, w1, b1, w2, b2, *, tm=None, th=512, residency_budget_bytes=None):
    """x: (..., D_in) -> (..., D_out).

    tm: token tile (auto from VMEM capacity if None; multiple of 8).
    th: hidden DMA chunk width for the tiled-hidden path (multiple of 128).
    residency_budget_bytes: override for the weight-residency byte budget
        (mainly for testing; None = derive from device VMEM capacity).
    """
    orig_shape = x.shape
    d_in = orig_shape[-1]
    x2d = x.reshape(-1, d_in)
    m = x2d.shape[0]
    d_hidden = w1.shape[1]
    d_out = w2.shape[1]

    bx = jnp.dtype(x.dtype).itemsize
    bw = jnp.dtype(w1.dtype).itemsize
    cap = _vmem_capacity_bytes()

    # ---- lane-align the output feature dim (lane-dense stores), slice later ----
    d_out_pad = _round_up(d_out, 128)
    if d_out_pad != d_out:
        w2 = jnp.pad(w2, ((0, 0), (0, d_out_pad - d_out)))
        b2 = jnp.pad(b2, ((0, d_out_pad - d_out),))

    # ---- token tile: large enough to clear the weight-streaming roofline ----
    if tm is None:
        tm = 1024 if cap >= (96 << 20) else 512   # v5e/v6e vs v7x (64 MiB / 2 TC)
    tm_eff = min(tm, _round_up(m, 8))

    # ---- weight residency: keep the hidden dim un-tiled if W1+W2 fit VMEM ----
    w_bytes_raw = ((d_in + d_out_pad) * d_hidden + d_hidden + d_out_pad) * bw
    if residency_budget_bytes is None:
        # Conservatively assume the weight blocks are double-buffered.
        resident = (2 * w_bytes_raw) <= int(0.5 * cap)
    else:
        resident = w_bytes_raw <= residency_budget_bytes

    if resident:
        th_eff = d_hidden          # full hidden dim in one block (DMAed once)
        h_pad = d_hidden
    else:
        th_eff = min(th, _round_up(d_hidden, 128))
        th_eff = max(128, (th_eff // 128) * 128)   # 128-aligned DMA chunk
        h_pad = _round_up(d_hidden, th_eff)

    ths = _pick_sub_tile(th_eff)

    def _vmem_est(tm_c):
        return (
            2 * tm_c * d_in * bx            # x tiles (double-buffered)
            + 2 * tm_c * d_out_pad * bx     # out tiles
            + tm_c * d_out_pad * 4          # f32 accumulator
            + 2 * tm_c * ths * 4            # live f32 hidden slices (overlap)
            + 2 * ((d_in + d_out_pad) * th_eff + 2 * th_eff + d_out_pad) * bw
        )

    # Shrink tm until the buffers fit comfortably in physical VMEM.
    while tm_eff > 8 and _vmem_est(tm_eff) > int(0.9 * cap):
        tm_eff = max(8, _round_up(tm_eff // 2, 8))

    m_pad = _round_up(m, tm_eff)
    if m_pad != m:
        x2d = jnp.pad(x2d, ((0, m_pad - m), (0, 0)))

    if h_pad != d_hidden:
        # Zero-padding is exact: GELU(0)=0 and the padded W2 rows are zero.
        w1 = jnp.pad(w1, ((0, 0), (0, h_pad - d_hidden)))
        b1 = jnp.pad(b1, ((0, h_pad - d_hidden),))
        w2 = jnp.pad(w2, ((0, h_pad - d_hidden), (0, 0)))

    b1_2d = b1.reshape(1, h_pad)
    b2_2d = b2.reshape(1, d_out_pad)

    n_tok_tiles = m_pad // tm_eff
    w_bytes = ((d_in + d_out_pad) * h_pad + h_pad + d_out_pad) * bw

    vmem_est = _vmem_est(tm_eff)
    vmem_limit = int(min(max(vmem_est + (4 << 20), 32 << 20), cap - (1 << 20)))
    vmem_limit = max(vmem_limit, 16 << 20)

    flops = 2 * m_pad * (d_in * h_pad + h_pad * d_out_pad)
    transcendentals = 4 * m_pad * h_pad            # ~4 EUP ops per erf element
    weight_stream = w_bytes if resident else w_bytes * n_tok_tiles
    bytes_accessed = m_pad * d_in * bx + m_pad * d_out_pad * bx + weight_stream

    cost = pl.CostEstimate(
        flops=int(flops),
        transcendentals=int(transcendentals),
        bytes_accessed=int(bytes_accessed),
    )

    if resident:
        # TODO(synk): on v5e, casting f32 weights to bf16 in the wrapper would
        # halve weight DMA bytes; kept as-passed to preserve reference numerics.
        kernel = functools.partial(_mlp_kernel_resident, ths=ths)
        out2d = pl.pallas_call(
            kernel,
            out_shape=jax.ShapeDtypeStruct((m_pad, d_out_pad), x.dtype),
            grid_spec=pltpu.PrefetchScalarGridSpec(
                num_scalar_prefetch=0,
                grid=(n_tok_tiles,),
                in_specs=[
                    pl.BlockSpec((tm_eff, d_in), lambda i: (i, 0)),        # x tile
                    pl.BlockSpec((d_in, h_pad), lambda i: (0, 0)),         # W1 (resident)
                    pl.BlockSpec((1, h_pad), lambda i: (0, 0)),            # b1
                    pl.BlockSpec((h_pad, d_out_pad), lambda i: (0, 0)),    # W2 (resident)
                    pl.BlockSpec((1, d_out_pad), lambda i: (0, 0)),        # b2
                ],
                out_specs=pl.BlockSpec((tm_eff, d_out_pad), lambda i: (i, 0)),
            ),
            compiler_params=pltpu.CompilerParams(
                dimension_semantics=("parallel",),
                vmem_limit_bytes=vmem_limit,
            ),
            cost_estimate=cost,
        )(x2d, w1, b1_2d, w2, b2_2d)
    else:
        kernel = functools.partial(_mlp_kernel_tiled, ths=ths)
        out2d = pl.pallas_call(
            kernel,
            out_shape=jax.ShapeDtypeStruct((m_pad, d_out_pad), x.dtype),
            grid_spec=pltpu.PrefetchScalarGridSpec(
                num_scalar_prefetch=0,
                grid=(n_tok_tiles, h_pad // th_eff),
                in_specs=[
                    pl.BlockSpec((tm_eff, d_in), lambda i, h: (i, 0)),     # x (resident over h)
                    pl.BlockSpec((d_in, th_eff), lambda i, h: (0, h)),     # W1 hidden chunk
                    pl.BlockSpec((1, th_eff), lambda i, h: (0, h)),        # b1 hidden chunk
                    pl.BlockSpec((th_eff, d_out_pad), lambda i, h: (h, 0)),  # W2 hidden chunk
                    pl.BlockSpec((1, d_out_pad), lambda i, h: (0, 0)),     # b2
                ],
                out_specs=pl.BlockSpec((tm_eff, d_out_pad), lambda i, h: (i, 0)),
                scratch_shapes=[pltpu.VMEM((tm_eff, d_out_pad), jnp.float32)],
            ),
            compiler_params=pltpu.CompilerParams(
                dimension_semantics=("parallel", "arbitrary"),
                vmem_limit_bytes=vmem_limit,
            ),
            cost_estimate=cost,
        )(x2d, w1, b1_2d, w2, b2_2d)

    out2d = out2d[:m, :d_out]
    return out2d.reshape(*orig_shape[:-1], d_out)


def _init_linear(key, fan_in, fan_out, dtype=jnp.float32):
    """Deterministic init mimicking nn.Linear (uniform +/- 1/sqrt(fan_in)).
    Returned weight is (fan_in, fan_out), i.e. transposed vs. PyTorch storage."""
    kw, kb = jax.random.split(key)
    bound = 1.0 / jnp.sqrt(fan_in)
    w = jax.random.uniform(kw, (fan_in, fan_out), dtype, -bound, bound)
    b = jax.random.uniform(kb, (fan_out,), dtype, -bound, bound)
    return w, b


def _mlp_reference(x, w1, b1, w2, b2):
    h = x @ w1 + b1
    h = 0.5 * h * (1.0 + lax.erf(h / jnp.sqrt(2.0)))
    return h @ w2 + b2


if __name__ == "__main__":
    key = jax.random.PRNGKey(0)
    k_x, k_fc1, k_fc2, k_x2, k_fc1b, k_fc2b = jax.random.split(key, 6)

    # ---- Test 1: small transformer-ish shapes (resident fast path) ----
    B, N, D_IN, D_HIDDEN, D_OUT = 2, 8, 32, 64, 32
    x = jax.random.normal(k_x, (B, N, D_IN), dtype=jnp.float32)
    w1, b1 = _init_linear(k_fc1, D_IN, D_HIDDEN)
    w2, b2 = _init_linear(k_fc2, D_HIDDEN, D_OUT)

    out = jax.block_until_ready(mlp_pallas(x, w1, b1, w2, b2))
    ref = _mlp_reference(x, w1, b1, w2, b2)
    assert out.shape == (B, N, D_OUT)
    assert jnp.allclose(out, ref, atol=1e-4, rtol=1e-4), "mismatch vs reference (test 1)"

    # ---- Test 2: token padding, non-128 d_out (lane pad), odd hidden dim ----
    B2, N2, D_IN2, D_HIDDEN2, D_OUT2 = 3, 50, 96, 700, 160
    x2 = jax.random.normal(k_x2, (B2, N2, D_IN2), dtype=jnp.float32)
    w1b, b1b = _init_linear(k_fc1b, D_IN2, D_HIDDEN2)
    w2b, b2b = _init_linear(k_fc2b, D_HIDDEN2, D_OUT2)

    out2 = jax.block_until_ready(mlp_pallas(x2, w1b, b1b, w2b, b2b))
    ref2 = _mlp_reference(x2, w1b, b1b, w2b, b2b)
    assert out2.shape == (B2, N2, D_OUT2)
    assert jnp.allclose(out2, ref2, atol=1e-4, rtol=1e-4), "mismatch vs reference (test 2)"

    # ---- Test 3: force the tiled-hidden (accumulator) path at small shapes ----
    out3 = jax.block_until_ready(
        mlp_pallas(x2, w1b, b1b, w2b, b2b, th=256, residency_budget_bytes=0)
    )
    assert out3.shape == (B2, N2, D_OUT2)
    assert jnp.allclose(out3, ref2, atol=1e-4, rtol=1e-4), "mismatch vs reference (test 3)"

    # ---- Test 4: bf16 activations/weights (f32 accumulation inside kernel) ----
    out_bf16 = jax.block_until_ready(
        mlp_pallas(
            x2.astype(jnp.bfloat16),
            w1b.astype(jnp.bfloat16), b1b.astype(jnp.bfloat16),
            w2b.astype(jnp.bfloat16), b2b.astype(jnp.bfloat16),
        )
    )
    assert out_bf16.shape == (B2, N2, D_OUT2)
    assert jnp.allclose(out_bf16.astype(jnp.float32), ref2, atol=0.25, rtol=0.25), \
        "bf16 path grossly off vs f32 reference"

    print("KERNEL_OK")
</pallas_src>

<mosaic_0001>
module attributes {stable_mosaic.version = 11 : i64} {
  func.func @_mlp_kernel_resident(%arg0: i32, %arg1: memref<16x32xf32, #tpu.memory_space<vmem>>, %arg2: memref<32x64xf32, #tpu.memory_space<vmem>>, %arg3: memref<1x64xf32, #tpu.memory_space<vmem>>, %arg4: memref<64x128xf32, #tpu.memory_space<vmem>>, %arg5: memref<1x128xf32, #tpu.memory_space<vmem>>, %arg6: memref<16x128xf32, #tpu.memory_space<vmem>>) attributes {dimension_semantics = [#tpu.dimension_semantics<parallel>], iteration_bounds = array<i64: 1>, scalar_prefetch = 0 : i64, scratch_operands = 0 : i64, tpu.core_type = #tpu.core_type<tc>, window_params = [{transform_indices = @transform_0, window_bounds = array<i64: 16, 32>}, {pipeline_mode = #tpu.pipeline_mode<synchronous>, transform_indices = @transform_1, window_bounds = array<i64: 32, 64>}, {pipeline_mode = #tpu.pipeline_mode<synchronous>, transform_indices = @transform_2, window_bounds = array<i64: 1, 64>}, {pipeline_mode = #tpu.pipeline_mode<synchronous>, transform_indices = @transform_3, window_bounds = array<i64: 64, 128>}, {pipeline_mode = #tpu.pipeline_mode<synchronous>, transform_indices = @transform_4, window_bounds = array<i64: 1, 128>}, {transform_indices = @transform_5, window_bounds = array<i64: 16, 128>}]} {
    %c0 = arith.constant 0 : index
    %c0_0 = arith.constant 0 : index
    %0 = vector.load %arg1[%c0, %c0_0] : memref<16x32xf32, #tpu.memory_space<vmem>>, vector<16x32xf32>
    %c0_1 = arith.constant 0 : index
    %c0_2 = arith.constant 0 : index
    %1 = vector.load %arg2[%c0_1, %c0_2] : memref<32x64xf32, #tpu.memory_space<vmem>>, vector<32x64xf32>
    %cst = arith.constant dense<0.000000e+00> : vector<16x64xf32>
    %2 = tpu.matmul %0, %1, %cst {dimension_numbers = #tpu.dot_dimension_numbers<[1], [0], [0], [1], [0, 0, 1, 1], [], []>} : vector<16x32xf32>, vector<32x64xf32>, vector<16x64xf32> -> vector<16x64xf32>
    %c0_3 = arith.constant 0 : index
    %c0_4 = arith.constant 0 : index
    %3 = vector.load %arg3[%c0_3, %c0_4] : memref<1x64xf32, #tpu.memory_space<vmem>>, vector<1x64xf32>
    %4 = vector.broadcast %3 : vector<1x64xf32> to vector<16x64xf32>
    %5 = arith.addf %2, %4 : vector<16x64xf32>
    %cst_5 = arith.constant 5.000000e-01 : f32
    %6 = vector.broadcast %cst_5 : f32 to vector<16x64xf32>
    %7 = arith.mulf %6, %5 : vector<16x64xf32>
    %cst_6 = arith.constant 0.707106769 : f32
    %8 = vector.broadcast %cst_6 : f32 to vector<16x64xf32>
    %9 = arith.mulf %5, %8 : vector<16x64xf32>
    %10 = math.erf %9 : vector<16x64xf32>
    %cst_7 = arith.constant 1.000000e+00 : f32
    %11 = vector.broadcast %cst_7 : f32 to vector<16x64xf32>
    %12 = arith.addf %11, %10 : vector<16x64xf32>
    %13 = arith.mulf %7, %12 : vector<16x64xf32>
    %c0_8 = arith.constant 0 : index
    %c0_9 = arith.constant 0 : index
    %14 = vector.load %arg4[%c0_8, %c0_9] : memref<64x128xf32, #tpu.memory_space<vmem>>, vector<64x128xf32>
    %cst_10 = arith.constant dense<0.000000e+00> : vector<16x128xf32>
    %15 = tpu.matmul %13, %14, %cst_10 {dimension_numbers = #tpu.dot_dimension_numbers<[1], [0], [0], [1], [0, 0, 1, 1], [], []>} : vector<16x64xf32>, vector<64x128xf32>, vector<16x128xf32> -> vector<16x128xf32>
    %c0_11 = arith.constant 0 : index
    %c0_12 = arith.constant 0 : index
    %16 = vector.load %arg5[%c0_11, %c0_12] : memref<1x128xf32, #tpu.memory_space<vmem>>, vector<1x128xf32>
    %17 = vector.broadcast %16 : vector<1x128xf32> to vector<16x128xf32>
    %18 = arith.addf %15, %17 : vector<16x128xf32>
    %c0_13 = arith.constant 0 : index
    %c0_14 = arith.constant 0 : index
    %19 = vector.load %arg6[%c0_13, %c0_14] : memref<16x128xf32, #tpu.memory_space<vmem>>, vector<16x128xf32>
    tpu.vector_store %arg6[%c0_13, %c0_14], %18 {strides = array<i32>} : memref<16x128xf32, #tpu.memory_space<vmem>>, vector<16x128xf32>,
    return
  }
  func.func @transform_0(%arg0: i32) -> (i32, i32) {
    %c0_i32 = arith.constant 0 : i32
    %c0_i32_0 = arith.constant 0 : i32
    return %arg0, %c0_i32 : i32, i32
  }
  func.func @transform_1(%arg0: i32) -> (i32, i32) {
    %c0_i32 = arith.constant 0 : i32
    %c0_i32_0 = arith.constant 0 : i32
    %c0_i32_1 = arith.constant 0 : i32
    return %c0_i32, %c0_i32_0 : i32, i32
  }
  func.func @transform_2(%arg0: i32) -> (i32, i32) {
    %c0_i32 = arith.constant 0 : i32
    %c0_i32_0 = arith.constant 0 : i32
    %c0_i32_1 = arith.constant 0 : i32
    return %c0_i32, %c0_i32_0 : i32, i32
  }
  func.func @transform_3(%arg0: i32) -> (i32, i32) {
    %c0_i32 = arith.constant 0 : i32
    %c0_i32_0 = arith.constant 0 : i32
    %c0_i32_1 = arith.constant 0 : i32
    return %c0_i32, %c0_i32_0 : i32, i32
  }
  func.func @transform_4(%arg0: i32) -> (i32, i32) {
    %c0_i32 = arith.constant 0 : i32
    %c0_i32_0 = arith.constant 0 : i32
    %c0_i32_1 = arith.constant 0 : i32
    return %c0_i32, %c0_i32_0 : i32, i32
  }
  func.func @transform_5(%arg0: i32) -> (i32, i32) {
    %c0_i32 = arith.constant 0 : i32
    %c0_i32_0 = arith.constant 0 : i32
    return %arg0, %c0_i32 : i32, i32
  }
}

</mosaic_0001>

<llo_original>
// kernel: mlp_pallas.1
$region0: #{mlp_pallas.1}
  #allocation0 [shape = 'u32[]', space=smem, size = 0x4, offset = 0x4, fixed_abs, tag = 'smem constant byte address 0x4 - core index']
  #allocation1 [shape = 'u32[144,128]{1,0:T(1,128)}', space=vmem, size = 0x12000, scoped, tag = 'internal scratch']
  %s0 = inlined_call_operand.vmem [shape: f32[16,32], index: 0, kind: input, shape index: {}]
  %s1 = inlined_call_operand.vmem [shape: f32[32,64], index: 1, kind: input, shape index: {}]
  %s2 = inlined_call_operand.vmem [shape: f32[1,64], index: 2, kind: input, shape index: {}]
  %s3 = inlined_call_operand.vmem [shape: f32[64,128], index: 3, kind: input, shape index: {}]
  %s4 = inlined_call_operand.vmem [shape: f32[1,128], index: 4, kind: input, shape index: {}]
  %s5 = inlined_call_operand.vmem [shape: f32[16,128], index: 5, kind: output, shape index: {}]
  %s6 = sld [smem:[#allocation0]]
  $region30: #{mlp_pallas.1} parent=0
    _
  %s8 = ssub.s32 1, %s6
  %s9 = scalar_select 0, %s8, %s6
  // Predicated region
  $region2: #{mlp_pallas.1} parent=0 // pred_check
    _
  $region3: #{mlp_pallas.1} parent=0 // pred_check_branch
    %11 = sbr.rel (0) target = $region5
  $region4: #{mlp_pallas.1} parent=0 // pred_region
    _
  $region5: #{mlp_pallas.1} parent=0 // pred_fallthru
    _
  // Predicated region
  $region6: #{mlp_pallas.1} parent=0 // pred_check
    _
  $region7: #{mlp_pallas.1} parent=0 // pred_check_branch
    %13 = sbr.rel (0) target = $region9
  $region8: #{mlp_pallas.1} parent=0 // pred_region
    _
  $region9: #{mlp_pallas.1} parent=0 // pred_fallthru
    _
  // Predicated region
  $region10: #{mlp_pallas.1} parent=0 // pred_check
    _
  $region11: #{mlp_pallas.1} parent=0 // pred_check_branch
    %15 = sbr.rel (0) target = $region13
  $region12: #{mlp_pallas.1} parent=0 // pred_region
    _
  $region13: #{mlp_pallas.1} parent=0 // pred_fallthru
    _
  // Predicated region
  $region14: #{mlp_pallas.1} parent=0 // pred_check
    _
  $region15: #{mlp_pallas.1} parent=0 // pred_check_branch
    %17 = sbr.rel (0) target = $region17
  $region16: #{mlp_pallas.1} parent=0 // pred_region
    _
  $region17: #{mlp_pallas.1} parent=0 // pred_fallthru
    _
  // Predicated region
  $region18: #{mlp_pallas.1} parent=0 // pred_check
    _
  $region19: #{mlp_pallas.1} parent=0 // pred_check_branch
    %19 = sbr.rel (0) target = $region21
  $region20: #{mlp_pallas.1} parent=0 // pred_region
    _
  $region21: #{mlp_pallas.1} parent=0 // pred_fallthru
    _
  %v20 = vld [vmem:[%s0] sm:$0xff]
  %v21 = vld [vmem:[%s0 + $0x8] sm:$0xff]
  %v22 = vld [vmem:[%s1] sm:$0xff]
  %v23 = vld [vmem:[%s1 + $0x8] sm:$0xff]
  %v24 = vld [vmem:[%s1 + $0x10] sm:$0xff]
  %v25 = vld [vmem:[%s1 + $0x18] sm:$0xff]
  %v26 = vld [vmem:[%s2] sm:$0x1]
  %v28 = vlaneseq
  %v29 = vshrl.u32 %v28, 7
  %v30 = vsub.s32 0, %v29
  %v31 = vrot.slane %v26, %v30
  %vm33 = vcmask 261120
  %v35 = vsel %vm33, %v20, 0
  %v38 = vsel %vm33, %v21, 0
  %40 = vmatprep.subr.mxu0 0.0
  %41 = vmatpush1.msra.mxu0 %v22
  %42 = vmatprep.subr.mxu0 0.0
  %43 = vmatpush1.msra.mxu0 %v23
  %44 = vmatprep.subr.mxu0 0.0
  %45 = vmatpush1.msra.mxu0 %v24
  %46 = vmatprep.subr.mxu0 0.0
  %47 = vmatpush1.msra.mxu0 %v25
  %48 = vmatprep.subr.mxu0 0.0
  %49 = vmatpush1.msra.mxu0 0.0
  %50 = vmatprep.subr.mxu0 0.0
  %51 = vmatpush1.msra.mxu0 0.0
  %52 = vmatprep.subr.mxu0 0.0
  %53 = vmatpush1.msra.mxu0 0.0
  %54 = vmatprep.subr.mxu0 0.0
  %55 = vmatpush1.msra.mxu0 0.0
  %56 = vmatprep.subr.mxu0 0.0
  %57 = vmatpush1.msra.mxu0 0.0
  %58 = vmatprep.subr.mxu0 0.0
  %59 = vmatpush1.msra.mxu0 0.0
  %60 = vmatprep.subr.mxu0 0.0
  %61 = vmatpush1.msra.mxu0 0.0
  %62 = vmatprep.subr.mxu0 0.0
  %63 = vmatpush1.msra.mxu0 0.0
  %64 = vmatprep.subr.mxu0 0.0
  %65 = vmatpush1.msra.mxu0 0.0
  %66 = vmatprep.subr.mxu0 0.0
  %67 = vmatpush1.msra.mxu0 0.0
  %68 = vmatprep.subr.mxu0 0.0
  %69 = vmatpush1.msra.mxu0 0.0
  %70 = vmatprep.subr.mxu0 0.0
  %71 = vmatpush1.msra.mxu0 0.0
  %72 = vmatprep.subr.mxu0 0.0
  %73 = vmatpush1.msra.mxu0 0.0
  %74 = vmatprep.subr.mxu0 0.0
  %75 = vmatpush1.msra.mxu0 0.0
  %76 = vmatprep.subr.mxu0 0.0
  %77 = vmatpush1.msra.mxu0 0.0
  %78 = vmatprep.subr.mxu0 0.0
  %79 = vmatpush1.msra.mxu0 0.0
  %80 = vmatprep.subr.mxu0 0.0
  %81 = vmatpush1.msra.mxu0 0.0
  %82 = vmatprep.subr.mxu0 0.0
  %83 = vmatpush1.msra.mxu0 0.0
  %84 = vmatprep.subr.mxu0 0.0
  %85 = vmatpush1.msra.mxu0 0.0
  %86 = vmatprep.subr.mxu0 0.0
  %87 = vmatpush1.msra.mxu0 0.0
  %88 = vmatprep.subr.mxu0 0.0
  %89 = vmatpush1.msra.mxu0 0.0
  %90 = vmatprep.subr.mxu0 0.0
  %91 = vmatpush1.msra.mxu0 0.0
  %92 = vmatprep.subr.mxu0 0.0
  %93 = vmatpush1.msra.mxu0 0.0
  %94 = vmatprep.subr.mxu0 0.0
  %95 = vmatpush1.msra.mxu0 0.0
  %96 = vmatprep.subr.mxu0 0.0
  %97 = vmatpush1.msra.mxu0 0.0
  %98 = vmatprep.subr.mxu0 0.0
  %99 = vmatpush1.msra.mxu0 0.0
  %100 = vmatprep.subr.mxu0 0.0
  %101 = vmatpush1.msra.mxu0 0.0
  %102 = vmatprep.subr.mxu0 0.0
  %103 = vmatpush1.msra.mxu0 0.0
  %104 = vmatprep.mubr.f32.mxu0 0.0
  %105 = vmatmul.mubr.f32.gmra.mrb[0].mxu0 %v35
  %v106 = vpop.f32.mrb[0].mxu0
  %v107 = vadd.f32 %v31, %v106
  %v108 = vpop.f32.mrb[0].mxu0
  %109 = vmatprep.mubr.f32.mxu0 0.0
  %110 = vmatmul.mubr.f32.gmra.mrb[0].mxu0 %v38
  %v111 = vpop.f32.mrb[0].mxu0
  %v112 = vadd.f32 %v31, %v111
  %v113 = vpop.f32.mrb[0].mxu0
  %114 = vdwg.mxu0
  %v115 = vmul.f32 %v107, 0.5
  %v116 = vmul.f32 %v112, 0.5
  %v117 = vmul.f32 %v107, 0.70710677
  %v118 = vmul.f32 %v112, 0.70710677
  %v119 = verf.f32.pop %v117
  %v120 = verf.f32.pop %v118
  %v121 = vadd.f32 %v119, 1.0
  %v122 = vadd.f32 %v120, 1.0
  %v123 = vmul.f32 %v115, %v121
  %v124 = vmul.f32 %v116, %v122
  %v125 = vld [vmem:[%s3] sm:$0xff]
  %v126 = vld [vmem:[%s3 + $0x8] sm:$0xff]
  %v127 = vld [vmem:[%s3 + $0x10] sm:$0xff]
  %v128 = vld [vmem:[%s3 + $0x18] sm:$0xff]
  %v129 = vld [vmem:[%s3 + $0x20] sm:$0xff]
  %v130 = vld [vmem:[%s3 + $0x28] sm:$0xff]
  %v131 = vld [vmem:[%s3 + $0x30] sm:$0xff]
  %v132 = vld [vmem:[%s3 + $0x38] sm:$0xff]
  %v133 = vld [vmem:[%s4] sm:$0x1]
  %v135 = vlaneseq
  %v136 = vshrl.u32 %v135, 7
  %v137 = vsub.s32 0, %v136
  %v138 = vrot.slane %v133, %v137
  %vm140 = vcmask 523264
  %v142 = vsel %vm140, %v123, 0
  %v145 = vsel %vm140, %v124, 0
  %147 = vmatprep.subr.mxu0 0.0
  %148 = vmatpush1.msra.mxu0 %v125
  %149 = vmatprep.subr.mxu0 0.0
  %150 = vmatpush1.msra.mxu0 %v126
  %151 = vmatprep.subr.mxu0 0.0
  %152 = vmatpush1.msra.mxu0 %v127
  %153 = vmatprep.subr.mxu0 0.0
  %154 = vmatpush1.msra.mxu0 %v128
  %155 = vmatprep.subr.mxu0 0.0
  %156 = vmatpush1.msra.mxu0 %v129
  %157 = vmatprep.subr.mxu0 0.0
  %158 = vmatpush1.msra.mxu0 %v130
  %159 = vmatprep.subr.mxu0 0.0
  %160 = vmatpush1.msra.mxu0 %v131
  %161 = vmatprep.subr.mxu0 0.0
  %162 = vmatpush1.msra.mxu0 %v132
  %163 = vmatprep.subr.mxu0 0.0
  %164 = vmatpush1.msra.mxu0 0.0
  %165 = vmatprep.subr.mxu0 0.0
  %166 = vmatpush1.msra.mxu0 0.0
  %167 = vmatprep.subr.mxu0 0.0
  %168 = vmatpush1.msra.mxu0 0.0
  %169 = vmatprep.subr.mxu0 0.0
  %170 = vmatpush1.msra.mxu0 0.0
  %171 = vmatprep.subr.mxu0 0.0
  %172 = vmatpush1.msra.mxu0 0.0
  %173 = vmatprep.subr.mxu0 0.0
  %174 = vmatpush1.msra.mxu0 0.0
  %175 = vmatprep.subr.mxu0 0.0
  %176 = vmatpush1.msra.mxu0 0.0
  %177 = vmatprep.subr.mxu0 0.0
  %178 = vmatpush1.msra.mxu0 0.0
  %179 = vmatprep.subr.mxu0 0.0
  %180 = vmatpush1.msra.mxu0 0.0
  %181 = vmatprep.subr.mxu0 0.0
  %182 = vmatpush1.msra.mxu0 0.0
  %183 = vmatprep.subr.mxu0 0.0
  %184 = vmatpush1.msra.mxu0 0.0
  %185 = vmatprep.subr.mxu0 0.0
  %186 = vmatpush1.msra.mxu0 0.0
  %187 = vmatprep.subr.mxu0 0.0
  %188 = vmatpush1.msra.mxu0 0.0
  %189 = vmatprep.subr.mxu0 0.0
  %190 = vmatpush1.msra.mxu0 0.0
  %191 = vmatprep.subr.mxu0 0.0
  %192 = vmatpush1.msra.mxu0 0.0
  %193 = vmatprep.subr.mxu0 0.0
  %194 = vmatpush1.msra.mxu0 0.0
  %195 = vmatprep.subr.mxu0 0.0
  %196 = vmatpush1.msra.mxu0 0.0
  %197 = vmatprep.subr.mxu0 0.0
  %198 = vmatpush1.msra.mxu0 0.0
  %199 = vmatprep.subr.mxu0 0.0
  %200 = vmatpush1.msra.mxu0 0.0
  %201 = vmatprep.subr.mxu0 0.0
  %202 = vmatpush1.msra.mxu0 0.0
  %203 = vmatprep.subr.mxu0 0.0
  %204 = vmatpush1.msra.mxu0 0.0
  %205 = vmatprep.subr.mxu0 0.0
  %206 = vmatpush1.msra.mxu0 0.0
  %207 = vmatprep.subr.mxu0 0.0
  %208 = vmatpush1.msra.mxu0 0.0
  %209 = vmatprep.subr.mxu0 0.0
  %210 = vmatpush1.msra.mxu0 0.0
  %211 = vmatprep.mubr.f32.mxu0 0.0
  %212 = vmatmul.mubr.f32.gmra.mrb[0].mxu0 %v142
  %v213 = vpop.f32.mrb[0].mxu0
  %v214 = vadd.f32 %v138, %v213
  %v215 = vpop.f32.mrb[0].mxu0
  %216 = vmatprep.mubr.f32.mxu0 0.0
  %217 = vmatmul.mubr.f32.gmra.mrb[0].mxu0 %v145
  %v218 = vpop.f32.mrb[0].mxu0
  %v219 = vadd.f32 %v138, %v218
  %v220 = vpop.f32.mrb[0].mxu0
  %221 = vdwg.mxu0
  %222 = vst [vmem:[%s5] sm:$0xff] %v214
  %223 = vst [vmem:[%s5 + $0x8] sm:$0xff] %v219
  // Predicated region
  $region22: #{mlp_pallas.1} parent=0 // pred_check
    _
  $region23: #{mlp_pallas.1} parent=0 // pred_check_branch
    %225 = sbr.rel (0) target = $region25
  $region24: #{mlp_pallas.1} parent=0 // pred_region
    _
  $region25: #{mlp_pallas.1} parent=0 // pred_fallthru
    _
  // Predicated region
  $region26: #{mlp_pallas.1} parent=0 // pred_check
    _
  $region27: #{mlp_pallas.1} parent=0 // pred_check_branch
    %227 = sbr.rel (0) target = $region29
  $region28: #{mlp_pallas.1} parent=0 // pred_region
    _
  $region29: #{mlp_pallas.1} parent=0 // pred_fallthru
    _

</llo_original>
